<compile_context>
chip_gen: v7x
topology: tpu7x:2x2x1
jax: 0.10.0
libtpu: 0.0.40
codegen_flags: <defaults>
</compile_context>

<pallas_src>
import functools

import jax
import jax.numpy as jnp
from jax.experimental import pallas as pl
from jax.experimental.pallas import tpu as pltpu


def _gated_cnn1d_kernel(x_ref, w_ref, bias_ref, gamma_ref, beta_ref, out_ref,
                        *, ksize, stride, wout, cout, ins_norm, eps):
    """One batch element per grid step.

    x_ref    : [stride, Cin, Lq]  bf16  polyphase-split, zero-padded input
    w_ref    : [K, 2*Cout, Cin]   bf16  fused conv_0 / conv_gate_0 weights
    bias_ref : [2*Cout, 1]        f32   conv bias + (b_0 | c_0), pre-folded
    gamma_ref: [2*Cout, 1]        f32   InstanceNorm weight (tiled x2)
    beta_ref : [2*Cout, 1]        f32   InstanceNorm bias   (tiled x2)
    out_ref  : [Cout, Wout]       f32   lane axis = width
    """
    acc = jnp.zeros((2 * cout, wout), dtype=jnp.float32)

    # Conv1d as K shifted matmuls, accumulated in f32 (bf16 x bf16 -> f32 MXU).
    # out[co, w] = sum_{ci,k} W[k, co, ci] * x[ci, w*stride + k]
    for r in range(stride):
        xr = x_ref[r]                                        # [Cin, Lq] bf16
        for q in range((ksize - 1 - r) // stride + 1):
            k = q * stride + r
            xs = jax.lax.slice_in_dim(xr, q, q + wout, axis=1)   # [Cin, Wout]
            acc = acc + jnp.dot(w_ref[k], xs,
                                preferred_element_type=jnp.float32)
    acc = acc + bias_ref[...]

    if ins_norm:
        # Per-sample, per-channel stats over the width (lane) axis; biased
        # variance, affine.  Done once on the fused [2*Cout, Wout] tensor.
        mu = jnp.mean(acc, axis=1, keepdims=True)
        centered = acc - mu
        var = jnp.mean(centered * centered, axis=1, keepdims=True)
        acc = (centered * jax.lax.rsqrt(var + eps) * gamma_ref[...]
               + beta_ref[...])

    a = acc[:cout, :]          # conv_0 path
    g = acc[cout:, :]          # conv_gate_0 path
    out_ref[...] = a * jax.nn.sigmoid(g)


def gated_cnn1d(x, w0, b0, wg, cg, b_0, c_0, gamma, beta,
                *, kernel, stride, padding, ins_norm=True, shuffle=False):
    """GatedCNN1d forward.

    x   : [N, Cin, L]       (PyTorch NCW layout)
    w0  : [Cout, Cin, K]    conv_0.weight
    b0  : [Cout]            conv_0.bias
    wg  : [Cout, Cin, K]    conv_gate_0.weight
    cg  : [Cout]            conv_gate_0.bias
    b_0 : [1, Cout, 1]      extra additive param
    c_0 : [1, Cout, 1]      extra additive param
    gamma/beta: [Cout]      InstanceNorm1d affine params
    returns [N, Cout, Wout]
    """
    if shuffle:
        # TODO(synk): pixel_shuffle path (n, c//2, 2w reshape before norm) not
        # wired into the kernel layout; default constructor uses shuffle=False.
        raise NotImplementedError("shuffle=True path not implemented")

    N, Cin, L = x.shape
    Cout, _, K = w0.shape
    Lp = L + 2 * padding
    Wout = (Lp - K) // stride + 1

    xp = jnp.pad(x, ((0, 0), (0, 0), (padding, padding)))

    # Polyphase split over the width axis so general stride becomes unit
    # shifts inside the kernel.  `stride` static strided slices, total element
    # count preserved -> no im2col-style K-fold HBM inflation.
    Lq = Wout + (K - 1) // stride
    phases = []
    for r in range(stride):
        xr = xp[:, :, r::stride]
        if xr.shape[2] < Lq:
            xr = jnp.pad(xr, ((0, 0), (0, 0), (0, Lq - xr.shape[2])))
        else:
            xr = xr[:, :, :Lq]
        phases.append(xr)
    x_s = jnp.stack(phases, axis=1).astype(jnp.bfloat16)   # [N, stride, Cin, Lq]

    # Fused conv_0 / conv_gate_0 parameters (single weight / bias stream).
    w_fused = jnp.concatenate([w0, wg], axis=0)                        # [2C, Cin, K]
    w_fused = jnp.transpose(w_fused, (2, 0, 1)).astype(jnp.bfloat16)   # [K, 2C, Cin]
    bias = jnp.concatenate([b0 + b_0.reshape(-1), cg + c_0.reshape(-1)])
    bias = bias.reshape(2 * Cout, 1).astype(jnp.float32)
    gamma2 = jnp.concatenate([gamma, gamma]).reshape(2 * Cout, 1).astype(jnp.float32)
    beta2 = jnp.concatenate([beta, beta]).reshape(2 * Cout, 1).astype(jnp.float32)

    kern = functools.partial(
        _gated_cnn1d_kernel, ksize=K, stride=stride, wout=Wout, cout=Cout,
        ins_norm=ins_norm, eps=1e-6)

    out = pl.pallas_call(
        kern,
        out_shape=jax.ShapeDtypeStruct((N, Cout, Wout), jnp.float32),
        grid=(N,),
        in_specs=[
            pl.BlockSpec((None, stride, Cin, Lq), lambda n: (n, 0, 0, 0)),  # x slab
            pl.BlockSpec((K, 2 * Cout, Cin), lambda n: (0, 0, 0)),          # fused W
            pl.BlockSpec((2 * Cout, 1), lambda n: (0, 0)),                  # fused bias
            pl.BlockSpec((2 * Cout, 1), lambda n: (0, 0)),                  # gamma
            pl.BlockSpec((2 * Cout, 1), lambda n: (0, 0)),                  # beta
        ],
        out_specs=pl.BlockSpec((None, Cout, Wout), lambda n: (n, 0, 0)),
        compiler_params=pltpu.CompilerParams(
            dimension_semantics=("parallel",),
            vmem_limit_bytes=32 * 1024 * 1024),
    )(x_s, w_fused, bias, gamma2, beta2)

    # TODO(synk): for very large L where the per-batch [Cin, L] bf16 slab no
    # longer fits VMEM, add a Wout-tile grid axis with a two-pass /
    # sum-sumsq-accumulator instance norm and single-buffered weights.
    return out


def _reference(x, w0, b0, wg, cg, b_0, c_0, gamma, beta,
               *, stride, padding, ins_norm=True, eps=1e-6):
    # plain-JAX reference for verification
    dn = jax.lax.conv_dimension_numbers(x.shape, w0.shape, ("NCH", "OIH", "NCH"))
    a = jax.lax.conv_general_dilated(x, w0, (stride,), [(padding, padding)],
                                     dimension_numbers=dn)
    a = a + b0[None, :, None] + b_0
    b = jax.lax.conv_general_dilated(x, wg, (stride,), [(padding, padding)],
                                     dimension_numbers=dn)
    b = b + cg[None, :, None] + c_0
    if ins_norm:
        def norm(t):
            mu = jnp.mean(t, axis=2, keepdims=True)
            var = jnp.mean((t - mu) ** 2, axis=2, keepdims=True)
            return ((t - mu) * jax.lax.rsqrt(var + eps)
                    * gamma[None, :, None] + beta[None, :, None])
        a = norm(a)
        b = norm(b)
    return a * jax.nn.sigmoid(b)


if __name__ == "__main__":
    # module config
    in_chs, out_chs, kernel, stride, padding = 4, 8, 3, 1, 1
    N, L = 2, 16

    key = jax.random.PRNGKey(0)
    keys = jax.random.split(key, 10)
    x = jax.random.normal(keys[0], (N, in_chs, L), dtype=jnp.float32)

    # deterministic synthetic parameters (shapes from GatedCNN1d.__init__)
    w0 = jax.random.normal(keys[1], (out_chs, in_chs, kernel), jnp.float32) * 0.1
    b0 = jax.random.normal(keys[2], (out_chs,), jnp.float32) * 0.1
    wg = jax.random.normal(keys[3], (out_chs, in_chs, kernel), jnp.float32) * 0.1
    cg = jax.random.normal(keys[4], (out_chs,), jnp.float32) * 0.1
    b_0 = jax.random.normal(keys[5], (1, out_chs, 1), jnp.float32)
    c_0 = jax.random.normal(keys[6], (1, out_chs, 1), jnp.float32)
    gamma = 1.0 + 0.1 * jax.random.normal(keys[7], (out_chs,), jnp.float32)
    beta = 0.1 * jax.random.normal(keys[8], (out_chs,), jnp.float32)

    out = gated_cnn1d(x, w0, b0, wg, cg, b_0, c_0, gamma, beta,
                      kernel=kernel, stride=stride, padding=padding,
                      ins_norm=True, shuffle=False)
    out = jax.block_until_ready(out)
    assert out.shape == (N, out_chs, L), out.shape

    # Exact-semantics check: reference fed the same bf16-rounded matmul inputs.
    q16 = lambda t: t.astype(jnp.bfloat16).astype(jnp.float32)
    ref_q = _reference(q16(x), q16(w0), b0, q16(wg), cg, b_0, c_0, gamma, beta,
                       stride=stride, padding=padding, ins_norm=True)
    err_q = float(jnp.max(jnp.abs(out - ref_q)))
    assert jnp.allclose(out, ref_q, atol=1e-3, rtol=1e-3), err_q

    # Sanity check vs full-f32 reference (bf16 MXU inputs -> looser tolerance).
    ref = _reference(x, w0, b0, wg, cg, b_0, c_0, gamma, beta,
                     stride=stride, padding=padding, ins_norm=True)
    err = float(jnp.max(jnp.abs(out - ref)))
    assert jnp.allclose(out, ref, atol=1e-1, rtol=1e-1), err

    print("KERNEL_OK")
</pallas_src>

<mosaic_0001>
module attributes {stable_mosaic.version = 11 : i64} {
  func.func @_gated_cnn1d_kernel(%arg0: i32, %arg1: memref<1x1x4x18xbf16, #tpu.memory_space<vmem>>, %arg2: memref<3x16x4xbf16, #tpu.memory_space<vmem>>, %arg3: memref<16x1xf32, #tpu.memory_space<vmem>>, %arg4: memref<16x1xf32, #tpu.memory_space<vmem>>, %arg5: memref<16x1xf32, #tpu.memory_space<vmem>>, %arg6: memref<1x8x16xf32, #tpu.memory_space<vmem>>) attributes {dimension_semantics = [#tpu.dimension_semantics<parallel>], iteration_bounds = array<i64: 2>, scalar_prefetch = 0 : i64, scratch_operands = 0 : i64, tpu.core_type = #tpu.core_type<tc>, window_params = [{transform_indices = @transform_0, window_bounds = array<i64: 1, 1, 4, 18>}, {pipeline_mode = #tpu.pipeline_mode<synchronous>, transform_indices = @transform_1, window_bounds = array<i64: 3, 16, 4>}, {pipeline_mode = #tpu.pipeline_mode<synchronous>, transform_indices = @transform_2, window_bounds = array<i64: 16, 1>}, {pipeline_mode = #tpu.pipeline_mode<synchronous>, transform_indices = @transform_3, window_bounds = array<i64: 16, 1>}, {pipeline_mode = #tpu.pipeline_mode<synchronous>, transform_indices = @transform_4, window_bounds = array<i64: 16, 1>}, {transform_indices = @transform_5, window_bounds = array<i64: 1, 8, 16>}]} {
    %cst = arith.constant 0.000000e+00 : f32
    %0 = vector.broadcast %cst : f32 to vector<16x16xf32>
    %c0 = arith.constant 0 : index
    %c0_0 = arith.constant 0 : index
    %c0_1 = arith.constant 0 : index
    %c0_2 = arith.constant 0 : index
    %1 = vector.load %arg1[%c0, %c0_0, %c0_1, %c0_2] : memref<1x1x4x18xbf16, #tpu.memory_space<vmem>>, vector<1x1x4x18xbf16>
    %2 = vector.shape_cast %1 : vector<1x1x4x18xbf16> to vector<4x18xbf16>
    %3 = vector.extract_strided_slice %2 {offsets = [0, 0], sizes = [4, 16], strides = [1, 1]} : vector<4x18xbf16> to vector<4x16xbf16>
    %c0_3 = arith.constant 0 : index
    %c0_4 = arith.constant 0 : index
    %c0_5 = arith.constant 0 : index
    %4 = vector.load %arg2[%c0_3, %c0_4, %c0_5] : memref<3x16x4xbf16, #tpu.memory_space<vmem>>, vector<1x16x4xbf16>
    %5 = vector.shape_cast %4 : vector<1x16x4xbf16> to vector<16x4xbf16>
    %cst_6 = arith.constant dense<0.000000e+00> : vector<16x16xf32>
    %6 = tpu.matmul %5, %3, %cst_6 {dimension_numbers = #tpu.dot_dimension_numbers<[1], [0], [0], [1], [0, 0, 1, 1], [], []>} : vector<16x4xbf16>, vector<4x16xbf16>, vector<16x16xf32> -> vector<16x16xf32>
    %7 = arith.addf %0, %6 : vector<16x16xf32>
    %8 = vector.extract_strided_slice %2 {offsets = [0, 1], sizes = [4, 16], strides = [1, 1]} : vector<4x18xbf16> to vector<4x16xbf16>
    %c1 = arith.constant 1 : index
    %c0_7 = arith.constant 0 : index
    %c0_8 = arith.constant 0 : index
    %9 = vector.load %arg2[%c1, %c0_7, %c0_8] : memref<3x16x4xbf16, #tpu.memory_space<vmem>>, vector<1x16x4xbf16>
    %10 = vector.shape_cast %9 : vector<1x16x4xbf16> to vector<16x4xbf16>
    %cst_9 = arith.constant dense<0.000000e+00> : vector<16x16xf32>
    %11 = tpu.matmul %10, %8, %cst_9 {dimension_numbers = #tpu.dot_dimension_numbers<[1], [0], [0], [1], [0, 0, 1, 1], [], []>} : vector<16x4xbf16>, vector<4x16xbf16>, vector<16x16xf32> -> vector<16x16xf32>
    %12 = arith.addf %7, %11 : vector<16x16xf32>
    %13 = vector.extract_strided_slice %2 {offsets = [0, 2], sizes = [4, 16], strides = [1, 1]} : vector<4x18xbf16> to vector<4x16xbf16>
    %c2 = arith.constant 2 : index
    %c0_10 = arith.constant 0 : index
    %c0_11 = arith.constant 0 : index
    %14 = vector.load %arg2[%c2, %c0_10, %c0_11] : memref<3x16x4xbf16, #tpu.memory_space<vmem>>, vector<1x16x4xbf16>
    %15 = vector.shape_cast %14 : vector<1x16x4xbf16> to vector<16x4xbf16>
    %cst_12 = arith.constant dense<0.000000e+00> : vector<16x16xf32>
    %16 = tpu.matmul %15, %13, %cst_12 {dimension_numbers = #tpu.dot_dimension_numbers<[1], [0], [0], [1], [0, 0, 1, 1], [], []>} : vector<16x4xbf16>, vector<4x16xbf16>, vector<16x16xf32> -> vector<16x16xf32>
    %17 = arith.addf %12, %16 : vector<16x16xf32>
    %c0_13 = arith.constant 0 : index
    %c0_14 = arith.constant 0 : index
    %18 = vector.load %arg3[%c0_13, %c0_14] : memref<16x1xf32, #tpu.memory_space<vmem>>, vector<16x1xf32>
    %19 = vector.broadcast %18 : vector<16x1xf32> to vector<16x16xf32>
    %20 = arith.addf %17, %19 : vector<16x16xf32>
    %cst_15 = arith.constant dense<0.000000e+00> : vector<16xf32>
    %21 = vector.multi_reduction <add>, %20, %cst_15 [1] : vector<16x16xf32> to vector<16xf32>
    %22 = vector.shape_cast %21 : vector<16xf32> to vector<16x1xf32>
    %cst_16 = arith.constant 1.600000e+01 : f32
    %23 = vector.broadcast %cst_16 : f32 to vector<16x1xf32>
    %24 = arith.divf %22, %23 : vector<16x1xf32>
    %25 = vector.broadcast %24 : vector<16x1xf32> to vector<16x16xf32>
    %26 = arith.subf %20, %25 : vector<16x16xf32>
    %27 = arith.mulf %26, %26 : vector<16x16xf32>
    %cst_17 = arith.constant dense<0.000000e+00> : vector<16xf32>
    %28 = vector.multi_reduction <add>, %27, %cst_17 [1] : vector<16x16xf32> to vector<16xf32>
    %29 = vector.shape_cast %28 : vector<16xf32> to vector<16x1xf32>
    %cst_18 = arith.constant 1.600000e+01 : f32
    %30 = vector.broadcast %cst_18 : f32 to vector<16x1xf32>
    %31 = arith.divf %29, %30 : vector<16x1xf32>
    %cst_19 = arith.constant 9.99999997E-7 : f32
    %32 = vector.broadcast %cst_19 : f32 to vector<16x1xf32>
    %33 = arith.addf %31, %32 : vector<16x1xf32>
    %34 = math.rsqrt %33 : vector<16x1xf32>
    %35 = vector.broadcast %34 : vector<16x1xf32> to vector<16x16xf32>
    %36 = arith.mulf %26, %35 : vector<16x16xf32>
    %c0_20 = arith.constant 0 : index
    %c0_21 = arith.constant 0 : index
    %37 = vector.load %arg4[%c0_20, %c0_21] : memref<16x1xf32, #tpu.memory_space<vmem>>, vector<16x1xf32>
    %38 = vector.broadcast %37 : vector<16x1xf32> to vector<16x16xf32>
    %39 = arith.mulf %36, %38 : vector<16x16xf32>
    %c0_22 = arith.constant 0 : index
    %c0_23 = arith.constant 0 : index
    %40 = vector.load %arg5[%c0_22, %c0_23] : memref<16x1xf32, #tpu.memory_space<vmem>>, vector<16x1xf32>
    %41 = vector.broadcast %40 : vector<16x1xf32> to vector<16x16xf32>
    %42 = arith.addf %39, %41 : vector<16x16xf32>
    %43 = vector.extract_strided_slice %42 {offsets = [0, 0], sizes = [8, 16], strides = [1, 1]} : vector<16x16xf32> to vector<8x16xf32>
    %44 = vector.extract_strided_slice %42 {offsets = [8, 0], sizes = [8, 16], strides = [1, 1]} : vector<16x16xf32> to vector<8x16xf32>
    %45 = arith.negf %44 : vector<8x16xf32>
    %46 = math.exp %45 : vector<8x16xf32>
    %cst_24 = arith.constant 1.000000e+00 : f32
    %47 = vector.broadcast %cst_24 : f32 to vector<8x16xf32>
    %48 = arith.addf %47, %46 : vector<8x16xf32>
    %49 = arith.divf %47, %48 : vector<8x16xf32>
    %50 = arith.mulf %43, %49 : vector<8x16xf32>
    %c0_25 = arith.constant 0 : index
    %c0_26 = arith.constant 0 : index
    %c0_27 = arith.constant 0 : index
    %51 = vector.load %arg6[%c0_25, %c0_26, %c0_27] : memref<1x8x16xf32, #tpu.memory_space<vmem>>, vector<1x8x16xf32>
    %52 = vector.shape_cast %51 : vector<1x8x16xf32> to vector<8x16xf32>
    %53 = vector.shape_cast %50 : vector<8x16xf32> to vector<1x8x16xf32>
    tpu.vector_store %arg6[%c0_25, %c0_26, %c0_27], %53 {strides = array<i32>} : memref<1x8x16xf32, #tpu.memory_space<vmem>>, vector<1x8x16xf32>,
    return
  }
  func.func @transform_0(%arg0: i32) -> (i32, i32, i32, i32) {
    %c0_i32 = arith.constant 0 : i32
    %c0_i32_0 = arith.constant 0 : i32
    %c0_i32_1 = arith.constant 0 : i32
    %c0_i32_2 = arith.constant 0 : i32
    return %arg0, %c0_i32, %c0_i32_0, %c0_i32_1 : i32, i32, i32, i32
  }
  func.func @transform_1(%arg0: i32) -> (i32, i32, i32) {
    %c0_i32 = arith.constant 0 : i32
    %c0_i32_0 = arith.constant 0 : i32
    %c0_i32_1 = arith.constant 0 : i32
    %c0_i32_2 = arith.constant 0 : i32
    return %c0_i32, %c0_i32_0, %c0_i32_1 : i32, i32, i32
  }
  func.func @transform_2(%arg0: i32) -> (i32, i32) {
    %c0_i32 = arith.constant 0 : i32
    %c0_i32_0 = arith.constant 0 : i32
    %c0_i32_1 = arith.constant 0 : i32
    return %c0_i32, %c0_i32_0 : i32, i32
  }
  func.func @transform_3(%arg0: i32) -> (i32, i32) {
    %c0_i32 = arith.constant 0 : i32
    %c0_i32_0 = arith.constant 0 : i32
    %c0_i32_1 = arith.constant 0 : i32
    return %c0_i32, %c0_i32_0 : i32, i32
  }
  func.func @transform_4(%arg0: i32) -> (i32, i32) {
    %c0_i32 = arith.constant 0 : i32
    %c0_i32_0 = arith.constant 0 : i32
    %c0_i32_1 = arith.constant 0 : i32
    return %c0_i32, %c0_i32_0 : i32, i32
  }
  func.func @transform_5(%arg0: i32) -> (i32, i32, i32) {
    %c0_i32 = arith.constant 0 : i32
    %c0_i32_0 = arith.constant 0 : i32
    %c0_i32_1 = arith.constant 0 : i32
    return %arg0, %c0_i32, %c0_i32_0 : i32, i32, i32
  }
}

</mosaic_0001>

<llo_original>
// kernel: tpu_custom_call.1
$region0: #{tpu_custom_call.1}
  #allocation0 [shape = 'u32[]', space=smem, size = 0x4, offset = 0x4, fixed_abs, tag = 'smem constant byte address 0x4 - core index']
  #allocation1 [shape = 'u32[144,128]{1,0:T(1,128)}', space=vmem, size = 0x12000, scoped, tag = 'internal scratch']
  %s0 = inlined_call_operand.vmem [shape: bf16[2,1,4,18], index: 0, kind: input, shape index: {}]
  %s1 = inlined_call_operand.vmem [shape: bf16[3,16,4], index: 1, kind: input, shape index: {}]
  %s2 = inlined_call_operand.vmem [shape: f32[16,1], index: 2, kind: input, shape index: {}]
  %s3 = inlined_call_operand.vmem [shape: f32[16,1], index: 3, kind: input, shape index: {}]
  %s4 = inlined_call_operand.vmem [shape: f32[16,1], index: 4, kind: input, shape index: {}]
  %s5 = inlined_call_operand.hbm [shape: f32[2,8,16], index: 5, kind: output, shape index: {}]
  %s6 = sld [smem:[#allocation0]]
  $region53: #{tpu_custom_call.1} parent=0
    _
  %s8 = ssub.s32 1, %s6
  %s9 = scalar_select 0, %s8, %s6
  $region1: #{tpu_custom_call.1} parent=0
    #allocation2 [shape = 'u8[8192]{0}', space=vmem, size = 0x2000, scoped, tag = 'output window, operand 0']
    #allocation3 [shape = 's32[2]{0}', space=sflag, size = 0x8, scoped, tag = 'scoped memory for tpu_custom_call.1']
    %10 = vsyncpa [#allocation3], 0
    %s11 = scalar_lea.sflag [#allocation3], 1
    %12 = vsyncpa %s11, 0
    loop: start=0, step=1, limit=4
    $region2: #{tpu_custom_call.1} parent=1 // loop_pre_header
      _
    $region3: #{tpu_custom_call.1} parent=1 // loop_header
      %s14 = sphi 0, %s18
      %p15 = scmp.ge.s32.totalorder %s14, 4
      %s24 = sphi 0, %s26
      %s27 = sphi 0, %s24
      %s28 = sphi 0, %s27
      %s44 = sphi 0, %s28
      %s48 = sphi 0, %s48
      %s50 = sphi 0, %s48
      %s51 = sphi 0, %s50
      %s65 = sphi 0, %s51
      %s69 = sphi 0, %s69
      %s71 = sphi 0, %s69
      %s72 = sphi 0, %s71
      %s86 = sphi 0, %s72
      %s90 = sphi 0, %s90
      %s92 = sphi 0, %s90
      %s93 = sphi 0, %s92
      %s107 = sphi 0, %s93
      %s111 = sphi 0, %s111
      %s113 = sphi 0, %s111
      %s114 = sphi 0, %s113
      %s128 = sphi 0, %s114
      %s134 = sphi 0, %s136
      %s137 = sphi 0, %s134
      %s138 = sphi 0, %s137
      %s154 = sphi 0, %s138
    $region4: #{tpu_custom_call.1} parent=1 // loop_header_branch
      %17 = sbr.rel (%p15) target = $region8
    $region5: #{tpu_custom_call.1} parent=1 // loop_body
      %s19 = ssub.s32 %s14, 1
      %s20 = ssub.s32 %s14, 2
      %s21 = sadd.s32 %s14, 1
      %s22 = ssub.s32 %s14, %s21
      %p23 = scmp.eq.s32.totalorder %s22, 0
      %s25 = sadd.s32 %s24, 1
      %s26 = scalar_select %p23, %s24, %s25
      %p29 = pneg %p23
      %p30 = scmp.eq.s32.totalorder %s14, 1
      %p31 = por %p29, %p30
      %p32 = scmp.ne.s32.totalorder %s24, %s27
      %p33 = scmp.eq.s32.totalorder %s14, 0
      %p34 = por %p32, %p33
      %p35 = scmp.ne.s32.totalorder %s24, %s27
      %p36 = scmp.eq.s32.totalorder %s19, 1
      %p37 = por %p35, %p36
      %p38 = scmp.ne.s32.totalorder %s27, %s28
      %p39 = scmp.eq.s32.totalorder %s19, 0
      %p40 = por %p38, %p39
      %p41 = scmp.ne.s32.totalorder %s27, %s28
      %p42 = scmp.eq.s32.totalorder %s20, 1
      %p43 = por %p41, %p42
      %p45 = scmp.ne.s32.totalorder %s28, %s44
      %p46 = scmp.eq.s32.totalorder %s20, 0
      %p47 = por %p45, %p46
      %s49 = sadd.s32 %s48, 1
      %p52 = scmp.eq.s32.totalorder %s14, 1
      %p53 = scmp.ne.s32.totalorder %s48, %s50
      %p54 = scmp.eq.s32.totalorder %s14, 0
      %p55 = por %p53, %p54
      %p56 = scmp.ne.s32.totalorder %s48, %s50
      %p57 = scmp.eq.s32.totalorder %s19, 1
      %p58 = por %p56, %p57
      %p59 = scmp.ne.s32.totalorder %s50, %s51
      %p60 = scmp.eq.s32.totalorder %s19, 0
      %p61 = por %p59, %p60
      %p62 = scmp.ne.s32.totalorder %s50, %s51
      %p63 = scmp.eq.s32.totalorder %s20, 1
      %p64 = por %p62, %p63
      %p66 = scmp.ne.s32.totalorder %s51, %s65
      %p67 = scmp.eq.s32.totalorder %s20, 0
      %p68 = por %p66, %p67
      %s70 = sadd.s32 %s69, 1
      %p73 = scmp.eq.s32.totalorder %s14, 1
      %p74 = scmp.ne.s32.totalorder %s69, %s71
      %p75 = scmp.eq.s32.totalorder %s14, 0
      %p76 = por %p74, %p75
      %p77 = scmp.ne.s32.totalorder %s69, %s71
      %p78 = scmp.eq.s32.totalorder %s19, 1
      %p79 = por %p77, %p78
      %p80 = scmp.ne.s32.totalorder %s71, %s72
      %p81 = scmp.eq.s32.totalorder %s19, 0
      %p82 = por %p80, %p81
      %p83 = scmp.ne.s32.totalorder %s71, %s72
      %p84 = scmp.eq.s32.totalorder %s20, 1
      %p85 = por %p83, %p84
      %p87 = scmp.ne.s32.totalorder %s72, %s86
      %p88 = scmp.eq.s32.totalorder %s20, 0
      %p89 = por %p87, %p88
      %s91 = sadd.s32 %s90, 1
      %p94 = scmp.eq.s32.totalorder %s14, 1
      %p95 = scmp.ne.s32.totalorder %s90, %s92
      %p96 = scmp.eq.s32.totalorder %s14, 0
      %p97 = por %p95, %p96
      %p98 = scmp.ne.s32.totalorder %s90, %s92
      %p99 = scmp.eq.s32.totalorder %s19, 1
      %p100 = por %p98, %p99
      %p101 = scmp.ne.s32.totalorder %s92, %s93
      %p102 = scmp.eq.s32.totalorder %s19, 0
      %p103 = por %p101, %p102
      %p104 = scmp.ne.s32.totalorder %s92, %s93
      %p105 = scmp.eq.s32.totalorder %s20, 1
      %p106 = por %p104, %p105
      %p108 = scmp.ne.s32.totalorder %s93, %s107
      %p109 = scmp.eq.s32.totalorder %s20, 0
      %p110 = por %p108, %p109
      %s112 = sadd.s32 %s111, 1
      %p115 = scmp.eq.s32.totalorder %s14, 1
      %p116 = scmp.ne.s32.totalorder %s111, %s113
      %p117 = scmp.eq.s32.totalorder %s14, 0
      %p118 = por %p116, %p117
      %p119 = scmp.ne.s32.totalorder %s111, %s113
      %p120 = scmp.eq.s32.totalorder %s19, 1
      %p121 = por %p119, %p120
      %p122 = scmp.ne.s32.totalorder %s113, %s114
      %p123 = scmp.eq.s32.totalorder %s19, 0
      %p124 = por %p122, %p123
      %p125 = scmp.ne.s32.totalorder %s113, %s114
      %p126 = scmp.eq.s32.totalorder %s20, 1
      %p127 = por %p125, %p126
      %p129 = scmp.ne.s32.totalorder %s114, %s128
      %p130 = scmp.eq.s32.totalorder %s20, 0
      %p131 = por %p129, %p130
      %s132 = ssub.s32 %s14, %s21
      %p133 = scmp.eq.s32.totalorder %s132, 0
      %s135 = sadd.s32 %s134, 1
      %s136 = scalar_select %p133, %s134, %s135
      %p139 = pneg %p133
      %p140 = scmp.eq.s32.totalorder %s14, 1
      %p141 = por %p139, %p140
      %p142 = scmp.ne.s32.totalorder %s134, %s137
      %p143 = scmp.eq.s32.totalorder %s14, 0
      %p144 = por %p142, %p143
      %p145 = scmp.ne.s32.totalorder %s134, %s137
      %p146 = scmp.eq.s32.totalorder %s19, 1
      %p147 = por %p145, %p146
      %p148 = scmp.ne.s32.totalorder %s137, %s138
      %p149 = scmp.eq.s32.totalorder %s19, 0
      %p150 = por %p148, %p149
      %p151 = scmp.ne.s32.totalorder %s137, %s138
      %p152 = scmp.eq.s32.totalorder %s20, 1
      %p153 = por %p151, %p152
      %p155 = scmp.ne.s32.totalorder %s138, %s154
      %p156 = scmp.eq.s32.totalorder %s20, 0
      %p157 = por %p155, %p156
      %p158 = scmp.le.s32.totalorder 1, %s14
      %p159 = scmp.lt.s32.totalorder %s14, 3
      %p160 = pnand %p158, %p159
      %p161 = pneg %p160
      // Predicated region
      $region9: #{tpu_custom_call.1} parent=5 // pred_check
        _
      $region10: #{tpu_custom_call.1} parent=5 // pred_check_branch
        %163 = sbr.rel (%p160) target = $region12
      $region11: #{tpu_custom_call.1} parent=5 // pred_region
        %s164 = ssub.s32 %s14, 1
        // Predicated region
        $region13: #{tpu_custom_call.1} parent=11 // pred_check
          %p165 = pneg %p61
        $region14: #{tpu_custom_call.1} parent=11 // pred_check_branch
          %167 = sbr.rel (%p165) target = $region16
        $region15: #{tpu_custom_call.1} parent=11 // pred_region
          _
        $region16: #{tpu_custom_call.1} parent=11 // pred_fallthru
          _
        // Predicated region
        $region17: #{tpu_custom_call.1} parent=11 // pred_check
          %p168 = pneg %p82
        $region18: #{tpu_custom_call.1} parent=11 // pred_check_branch
          %170 = sbr.rel (%p168) target = $region20
        $region19: #{tpu_custom_call.1} parent=11 // pred_region
          _
        $region20: #{tpu_custom_call.1} parent=11 // pred_fallthru
          _
        // Predicated region
        $region21: #{tpu_custom_call.1} parent=11 // pred_check
          %p171 = pneg %p103
        $region22: #{tpu_custom_call.1} parent=11 // pred_check_branch
          %173 = sbr.rel (%p171) target = $region24
        $region23: #{tpu_custom_call.1} parent=11 // pred_region
          _
        $region24: #{tpu_custom_call.1} parent=11 // pred_fallthru
          _
        // Predicated region
        $region25: #{tpu_custom_call.1} parent=11 // pred_check
          %p174 = pneg %p124
        $region26: #{tpu_custom_call.1} parent=11 // pred_check_branch
          %176 = sbr.rel (%p174) target = $region28
        $region27: #{tpu_custom_call.1} parent=11 // pred_region
          _
        $region28: #{tpu_custom_call.1} parent=11 // pred_fallthru
          _
      $region12: #{tpu_custom_call.1} parent=5 // pred_fallthru
        _
      %p177 = scmp.lt.s32.totalorder %s14, 2
      // Predicated region
      $region29: #{tpu_custom_call.1} parent=5 // pred_check
        %p178 = pneg %p177
      $region30: #{tpu_custom_call.1} parent=5 // pred_check_branch
        %180 = sbr.rel (%p178) target = $region32
      $region31: #{tpu_custom_call.1} parent=5 // pred_region
        // Predicated region
        $region33: #{tpu_custom_call.1} parent=31 // pred_check
          %p181 = pneg %p34
        $region34: #{tpu_custom_call.1} parent=31 // pred_check_branch
          %183 = sbr.rel (%p181) target = $region36
        $region35: #{tpu_custom_call.1} parent=31 // pred_region
          %p184 = scmp.lt.s32.totalorder %s14, 1
          %s185 = scalar_select %p184, %s14, 1
          %s186 = smul.addr %s185, 2
          %s187 = scalar_lea.vmem %s0, %s186
        $region36: #{tpu_custom_call.1} parent=31 // pred_fallthru
          _
      $region32: #{tpu_custom_call.1} parent=5 // pred_fallthru
        _
      %p188 = scmp.le.s32.totalorder 1, %s14
      %p189 = scmp.lt.s32.totalorder %s14, 3
      %p190 = pnand %p188, %p189
      %p191 = pneg %p190
      // Predicated region
      $region37: #{tpu_custom_call.1} parent=5 // pred_check
        _
      $region38: #{tpu_custom_call.1} parent=5 // pred_check_branch
        %193 = sbr.rel (%p190) target = $region40
      $region39: #{tpu_custom_call.1} parent=5 // pred_region
        %s194 = ssub.s32 %s14, 1
        %p195 = scmp.lt.s32.totalorder %s19, 1
        %s196 = scalar_select %p195, %s19, 1
        %s197 = smul.addr %s196, 2
        %s198 = scalar_lea.vmem %s0, %s197
        %p199 = pneg %p40
        %p200 = pneg %p37
        %p201 = pneg %p61
        %p202 = pneg %p58
        %p203 = pneg %p82
        %p204 = pneg %p79
        %p205 = pneg %p103
        %p206 = pneg %p100
        %p207 = pneg %p124
        %p208 = pneg %p121
        %p209 = pneg %p150
        %p210 = pneg %p147
        %s211 = sand.u32 %s137, 1
        %s212 = scalar_lea.sflag [#allocation3], %s211
        %s213 = sand.u32 %s137, 1
        %s214 = smul.addr %s213, 8
        %s215 = scalar_lea.vmem [#allocation2], %s214
        %p216 = scmp.lt.s32.totalorder %s19, 1
        %s217 = scalar_select %p216, %s19, 1
        %s218 = smul.addr %s217, 2
        %s219 = scalar_lea.vmem %s0, %s218
        %v221 = vld [vmem:[%s219] sm:$0x3]
        %v222 = vld [vmem:[%s1] sm:$0xf]
        %v223 = vld [vmem:[%s1 + $0x4] sm:$0xf]
        %s224 = scalar_lea.vmem %s1, 8
        %v225 = vld [vmem:[%s224] sm:$0xf]
        %v226 = vld [vmem:[%s224 + $0x4] sm:$0xf]
        %v229 = vunpack.c.l.b16 %v225
        %v230 = vunpack.c.l.b16 %v226
        %v231 = vpack.c.b16 %v230, %v229
        %v234 = vunpack.c.l.s4 1983009808
        %v235 = vunpack.c.0.s8 %v234
        %v236 = vlaneseq
        %v237 = vshrl.u32 %v236, 7
        %v238 = vsub.s32 %v235, %v237
        %v239 = vrot.slane %v221, %v238
        %240 = vrot.lane.b32.xlu0 %v239, 127
        %v241 = vpop.permute.xlu0 %240
        %vm242 = vcmask 31744
        %v244 = vsel %vm242, %v231, 0
        %vm246 = vcmask 1041408
        %v248 = vsel %vm246, %v241, 0
        %250 = vmatprep.subr.bf16.mxu0 0
        %251 = vmatpush1.bf16.msra.mxu0 %v248
        %252 = vmatprep.subr.bf16.mxu0 0
        %253 = vmatpush1.bf16.msra.mxu0 0
        %254 = vmatprep.subr.bf16.mxu0 0
        %255 = vmatpush1.bf16.msra.mxu0 0
        %256 = vmatprep.subr.bf16.mxu0 0
        %257 = vmatpush1.bf16.msra.mxu0 0
        %258 = vmatprep.subr.bf16.mxu0 0
        %259 = vmatpush1.bf16.msra.mxu0 0
        %260 = vmatprep.subr.bf16.mxu0 0
        %261 = vmatpush1.bf16.msra.mxu0 0
        %262 = vmatprep.subr.bf16.mxu0 0
        %263 = vmatpush1.bf16.msra.mxu0 0
        %264 = vmatprep.subr.bf16.mxu0 0
        %265 = vmatpush1.bf16.msra.mxu0 0
        %266 = vmatprep.subr.bf16.mxu0 0
        %267 = vmatpush1.bf16.msra.mxu0 0
        %268 = vmatprep.subr.bf16.mxu0 0
        %269 = vmatpush1.bf16.msra.mxu0 0
        %270 = vmatprep.subr.bf16.mxu0 0
        %271 = vmatpush1.bf16.msra.mxu0 0
        %272 = vmatprep.subr.bf16.mxu0 0
        %273 = vmatpush1.bf16.msra.mxu0 0
        %274 = vmatprep.subr.bf16.mxu0 0
        %275 = vmatpush1.bf16.msra.mxu0 0
        %276 = vmatprep.subr.bf16.mxu0 0
        %277 = vmatpush1.bf16.msra.mxu0 0
        %278 = vmatprep.subr.bf16.mxu0 0
        %279 = vmatpush1.bf16.msra.mxu0 0
        %280 = vmatprep.subr.bf16.mxu0 0
        %281 = vmatpush1.bf16.msra.mxu0 0
        %282 = vmatprep.mubr.bf16.mxu0 0
        %283 = vmatmul.mubr.bf16.gmra.mrb[0].mxu0 %v244
        %v284 = vpop.f32.mrb[0].mxu0
        %v285 = vadd.f32 0.0, %v284
        %v286 = vpop.f32.mrb[0].mxu0
        %v287 = vpop.f32.mrb[0].mxu0
        %v288 = vadd.f32 0.0, %v287
        %v289 = vpop.f32.mrb[0].mxu0
        %290 = vdwg.mxu0
        %v293 = vunpack.c.l.b16 %v222
        %v294 = vunpack.c.l.b16 %v223
        %v295 = vpack.c.b16 %v294, %v293
        %v297 = vsel %vm242, %v295, 0
        %v300 = vsel %vm246, %v221, 0
        %302 = vmatprep.subr.bf16.mxu0 0
        %303 = vmatpush1.bf16.msra.mxu0 %v300
        %304 = vmatprep.subr.bf16.mxu0 0
        %305 = vmatpush1.bf16.msra.mxu0 0
        %306 = vmatprep.subr.bf16.mxu0 0
        %307 = vmatpush1.bf16.msra.mxu0 0
        %308 = vmatprep.subr.bf16.mxu0 0
        %309 = vmatpush1.bf16.msra.mxu0 0
        %310 = vmatprep.subr.bf16.mxu0 0
        %311 = vmatpush1.bf16.msra.mxu0 0
        %312 = vmatprep.subr.bf16.mxu0 0
        %313 = vmatpush1.bf16.msra.mxu0 0
        %314 = vmatprep.subr.bf16.mxu0 0
        %315 = vmatpush1.bf16.msra.mxu0 0
        %316 = vmatprep.subr.bf16.mxu0 0
        %317 = vmatpush1.bf16.msra.mxu0 0
        %318 = vmatprep.subr.bf16.mxu0 0
        %319 = vmatpush1.bf16.msra.mxu0 0
        %320 = vmatprep.subr.bf16.mxu0 0
        %321 = vmatpush1.bf16.msra.mxu0 0
        %322 = vmatprep.subr.bf16.mxu0 0
        %323 = vmatpush1.bf16.msra.mxu0 0
        %324 = vmatprep.subr.bf16.mxu0 0
        %325 = vmatpush1.bf16.msra.mxu0 0
        %326 = vmatprep.subr.bf16.mxu0 0
        %327 = vmatpush1.bf16.msra.mxu0 0
        %328 = vmatprep.subr.bf16.mxu0 0
        %329 = vmatpush1.bf16.msra.mxu0 0
        %330 = vmatprep.subr.bf16.mxu0 0
        %331 = vmatpush1.bf16.msra.mxu0 0
        %332 = vmatprep.subr.bf16.mxu0 0
        %333 = vmatpush1.bf16.msra.mxu0 0
        %334 = vmatprep.mubr.bf16.mxu0 0
        %335 = vmatmul.mubr.bf16.gmra.mrb[0].mxu0 %v297
        %v336 = vpop.f32.mrb[0].mxu0
        %v337 = vadd.f32 %v285, %v336
        %v338 = vpop.f32.mrb[0].mxu0
        %v339 = vpop.f32.mrb[0].mxu0
        %v340 = vadd.f32 %v288, %v339
        %v341 = vpop.f32.mrb[0].mxu0
        %342 = vdwg.mxu0
        %s343 = scalar_lea.vmem %s1, 16
        %v344 = vld [vmem:[%s343] sm:$0xf]
        %v345 = vld [vmem:[%s343 + $0x4] sm:$0xf]
        %v348 = vunpack.c.l.b16 %v344
        %v349 = vunpack.c.l.b16 %v345
        %v350 = vpack.c.b16 %v349, %v348
        %351 = vrot.lane.b32.xlu0 %v239, 126
        %v352 = vpop.permute.xlu0 %351
        %v354 = vsel %vm242, %v350, 0
        %v357 = vsel %vm246, %v352, 0
        %359 = vmatprep.subr.bf16.mxu0 0
        %360 = vmatpush1.bf16.msra.mxu0 %v357
        %361 = vmatprep.subr.bf16.mxu0 0
        %362 = vmatpush1.bf16.msra.mxu0 0
        %363 = vmatprep.subr.bf16.mxu0 0
        %364 = vmatpush1.bf16.msra.mxu0 0
        %365 = vmatprep.subr.bf16.mxu0 0
        %366 = vmatpush1.bf16.msra.mxu0 0
        %367 = vmatprep.subr.bf16.mxu0 0
        %368 = vmatpush1.bf16.msra.mxu0 0
        %369 = vmatprep.subr.bf16.mxu0 0
        %370 = vmatpush1.bf16.msra.mxu0 0
        %371 = vmatprep.subr.bf16.mxu0 0
        %372 = vmatpush1.bf16.msra.mxu0 0
        %373 = vmatprep.subr.bf16.mxu0 0
        %374 = vmatpush1.bf16.msra.mxu0 0
        %375 = vmatprep.subr.bf16.mxu0 0
        %376 = vmatpush1.bf16.msra.mxu0 0
        %377 = vmatprep.subr.bf16.mxu0 0
        %378 = vmatpush1.bf16.msra.mxu0 0
        %379 = vmatprep.subr.bf16.mxu0 0
        %380 = vmatpush1.bf16.msra.mxu0 0
        %381 = vmatprep.subr.bf16.mxu0 0
        %382 = vmatpush1.bf16.msra.mxu0 0
        %383 = vmatprep.subr.bf16.mxu0 0
        %384 = vmatpush1.bf16.msra.mxu0 0
        %385 = vmatprep.subr.bf16.mxu0 0
        %386 = vmatpush1.bf16.msra.mxu0 0
        %387 = vmatprep.subr.bf16.mxu0 0
        %388 = vmatpush1.bf16.msra.mxu0 0
        %389 = vmatprep.subr.bf16.mxu0 0
        %390 = vmatpush1.bf16.msra.mxu0 0
        %391 = vmatprep.mubr.bf16.mxu0 0
        %392 = vmatmul.mubr.bf16.gmra.mrb[0].mxu0 %v354
        %v393 = vpop.f32.mrb[0].mxu0
        %v394 = vadd.f32 0.0, %v393
        %v395 = vpop.f32.mrb[0].mxu0
        %v396 = vpop.f32.mrb[0].mxu0
        %v397 = vadd.f32 0.0, %v396
        %v398 = vpop.f32.mrb[0].mxu0
        %399 = vdwg.mxu0
        %v400 = vadd.f32 %v337, %v394
        %v401 = vadd.f32 %v340, %v397
        %v402 = vld [vmem:[%s2] sm:$0xff]
        %v403 = vld [vmem:[%s2 + $0x8] sm:$0xff]
        %405 = vset.pattern.permute.xlu0 0
        %406 = vperm.xlu0 %405, %v402
        %v407 = vpop.permute.xlu0 %406
        %410 = vset.pattern.permute.xlu0 0
        %411 = vperm.xlu0 %410, %v403
        %v412 = vpop.permute.xlu0 %411
        %v414 = vadd.f32 %v400, %v407
        %v415 = vadd.f32 %v401, %v412
        %vm416 = vcmask 130048
        %v417 = vsel %vm416, %v414, 0.0
        %418 = vadd.xlane.f32.xlu0 %v417
        %v419 = vpop.xlane.xlu0 %418
        %v420 = vsel %vm416, %v415, 0.0
        %421 = vadd.xlane.f32.xlu0 %v420
        %v422 = vpop.xlane.xlu0 %421
        %v423 = vrcp.pop 16.0
        %v424 = vmul.f32 %v419, %v423
        %v425 = vmul.f32 %v422, %v423
        %v426 = vsub.f32 %v414, %v424
        %v427 = vsub.f32 %v415, %v425
        %v428 = vmul.f32 %v426, %v426
        %v429 = vmul.f32 %v427, %v427
        %v430 = vsel %vm416, %v428, 0.0
        %431 = vadd.xlane.f32.xlu0 %v430
        %v432 = vpop.xlane.xlu0 %431
        %v433 = vsel %vm416, %v429, 0.0
        %434 = vadd.xlane.f32.xlu0 %v433
        %v435 = vpop.xlane.xlu0 %434
        %v436 = vmul.f32 %v432, %v423
        %v437 = vmul.f32 %v435, %v423
        %v438 = vadd.f32 %v436, 1e-06
        %v439 = vadd.f32 %v437, 1e-06
        %v440 = vrsqrt.pop %v438
        %v441 = vrsqrt.pop %v439
        %v442 = vmul.f32 %v426, %v440
        %v443 = vmul.f32 %v427, %v441
        %v444 = vld [vmem:[%s3] sm:$0xff]
        %v445 = vld [vmem:[%s3 + $0x8] sm:$0xff]
        %447 = vset.pattern.permute.xlu0 0
        %448 = vperm.xlu0 %447, %v444
        %v449 = vpop.permute.xlu0 %448
        %452 = vset.pattern.permute.xlu0 0
        %453 = vperm.xlu0 %452, %v445
        %v454 = vpop.permute.xlu0 %453
        %v456 = vmul.f32 %v442, %v449
        %v457 = vmul.f32 %v443, %v454
        %v458 = vld [vmem:[%s4] sm:$0xff]
        %v459 = vld [vmem:[%s4 + $0x8] sm:$0xff]
        %461 = vset.pattern.permute.xlu0 0
        %462 = vperm.xlu0 %461, %v458
        %v463 = vpop.permute.xlu0 %462
        %466 = vset.pattern.permute.xlu0 0
        %467 = vperm.xlu0 %466, %v459
        %v468 = vpop.permute.xlu0 %467
        %v470 = vadd.f32 %v456, %v463
        %v471 = vadd.f32 %v457, %v468
        %v472 = vxor.u32 %v471, 2147483648
        %v473 = vmul.f32 %v472, 1.442695
        %v474 = vpow.pop %v473
        %v475 = vadd.f32 %v474, 1.0
        %v476 = vrcp.pop %v475
        %v477 = vmul.f32 1.0, %v476
        %v478 = vmul.f32 %v470, %v477
        %479 = vst.msk [vmem:[%s215] sm:$0xff] %vm416, %v478
        %s480 = sand.u32 %s137, 1
        %s481 = scalar_lea.sflag [#allocation3], %s480
        %s482 = sand.u32 %s137, 1
        %s483 = smul.addr %s482, 8
        %s484 = scalar_lea.vmem [#allocation2], %s483
        // Predicated region
        $region41: #{tpu_custom_call.1} parent=39 // pred_check
          %p485 = pneg %p147
        $region42: #{tpu_custom_call.1} parent=39 // pred_check_branch
          %487 = sbr.rel (%p485) target = $region44
        $region43: #{tpu_custom_call.1} parent=39 // pred_region
          %s489 = ssub.s32 128, 128
          %490 = vsyncadd %s481, %s489
          %s491 = smul.addr %s19, 128
          %s492 = scalar_lea.hbm %s5, %s491
          %s494 = sshll.u32 %s484, 4
          %s495 = int_to_ptr.vmem [resolvable:$true] %s494
          %497 = dma.vmem_to_hbm [thread:$0]  %s495, 128, %s492, %s481
        $region44: #{tpu_custom_call.1} parent=39 // pred_fallthru
          _
      $region40: #{tpu_custom_call.1} parent=5 // pred_fallthru
        _
      %p498 = scmp.le.s32.totalorder 2, %s14
      // Predicated region
      $region45: #{tpu_custom_call.1} parent=5 // pred_check
        %p499 = pneg %p498
      $region46: #{tpu_custom_call.1} parent=5 // pred_check_branch
        %501 = sbr.rel (%p499) target = $region48
      $region47: #{tpu_custom_call.1} parent=5 // pred_region
        %s502 = ssub.s32 %s14, 2
        // Predicated region
        $region49: #{tpu_custom_call.1} parent=47 // pred_check
          %p503 = pneg %p153
        $region50: #{tpu_custom_call.1} parent=47 // pred_check_branch
          %505 = sbr.rel (%p503) target = $region52
        $region51: #{tpu_custom_call.1} parent=47 // pred_region
          %s506 = sand.u32 %s138, 1
          %s507 = scalar_lea.sflag [#allocation3], %s506
          %s508 = sand.u32 %s138, 1
          %s509 = smul.addr %s508, 8
          %s510 = scalar_lea.vmem [#allocation2], %s509
          %511 = dma.done %s507, 128
        $region52: #{tpu_custom_call.1} parent=47 // pred_fallthru
          _
      $region48: #{tpu_custom_call.1} parent=5 // pred_fallthru
        _
    $region6: #{tpu_custom_call.1} parent=1 // loop_footer
      %s18 = sadd.s32 1, %s14
    $region7: #{tpu_custom_call.1} parent=1 // loop_footer_branch
      %13 = sbr.rel target = $region3
    $region8: #{tpu_custom_call.1} parent=1 // loop_exit
      _
    %512 = vsyncpa [#allocation3], 1
    %s513 = scalar_lea.sflag [#allocation3], 1
    %514 = vsyncpa %s513, 1

</llo_original>
